<compile_context>
chip_gen: v7x
topology: tpu7x:2x2x1
jax: 0.10.0
libtpu: 0.0.40
codegen_flags: <defaults>
</compile_context>

<pallas_src>
import jax
import jax.numpy as jnp
from jax.experimental import pallas as pl
from jax.experimental.pallas import tpu as pltpu

# ---- problem sizes (x is (batch, protein_len, aa_labels) as in the module) ----
B, L, A, ZD = 2, 8, 21, 6          # batch, protein_len, aa_labels (21 aa), z_dim
HE, HG, HD = 32, 32, 16            # encoder / generator / discriminator hidden widths
LANES = 128                        # one lane tile
ORB = 16                           # output rows per protein: L logits rows + 1 small row + pad
EPS_COL = 64                       # lane offset of eps inside the packed input slab

# ---- weight-slab row layout: single (W_ROWS, 128) f32 slab; every matmul RHS slice is
#      full-lane-width and starts at a sublane multiple of 8 ----
R_GEN = 0           # rows   0: 64 -> fused [Wc|Wf1|Wg1 ; 0|Wf0|Wg0]   (K = 64)
R_HEAD = 64         # rows  64: 96 -> [Wmu | Wvar]                     (K = HE)
R_WO = 96           # rows  96:128 -> Wo padded to 128 lanes           (K = HG)
R_ZD = 128          # rows 128:134 -> [Wz | Wd1]                       (K = ZD)
R_RC = 136          # rows 136:152 -> [Wr | Wcl]                       (K = HD)
R_VEC = 152         # rows 152:160 -> bias / cond-channel rows
W_ROWS = 160
# vec-row indices (relative to R_VEC)
V_BGEN, V_BHEAD, V_BZD, V_BRC, V_WC1, V_WC0, V_BO = 0, 1, 2, 3, 4, 5, 6


# ---------------------------------------------------------------------------
# Fused forward kernel — one grid step per protein in the batch.
#   inputs : x block (L, 128)  [lanes 0:A one-hot x, row 0 lanes 64:70 = eps]
#            W block (160, 128) packed weight slab (constant block index)
#   output : (ORB, 128) block = [logits rows 0:L | packed small row L | zero pad]
# ---------------------------------------------------------------------------
def fused_kernel(x_ref, w_ref, out_ref):
    f32 = jnp.float32
    xin = x_ref[...]                                   # (L, 128)
    x32 = xin[:, 0:HE]                                 # one-hot x (lanes A:32 are zero)
    eps = xin[0:1, EPS_COL:EPS_COL + ZD]               # (1, ZD) reparam noise (torch.rand_like)
    vec = w_ref[R_VEC:R_VEC + 8, :]                    # all bias / cond rows in one read

    # causal shift (conv kernel=2): xp[l] = x[l-1], xp[0] = 0 — O(L) sublane shift,
    # no quadratic shift matrix.
    xp32 = jnp.concatenate([jnp.zeros((1, HE), f32), x32[0:L - 1, :]], axis=0)

    # ---- single fused MXU pass: encoder conv + generator filter/gate pre-activations ----
    xcat = jnp.concatenate([x32, xp32], axis=1)        # (L, 64)
    gen = (jnp.dot(xcat, w_ref[R_GEN:R_GEN + 64, :], preferred_element_type=f32)
           + vec[V_BGEN:V_BGEN + 1, :])                # (L, 128): [h_pre | filt | gate | 0]

    # ---------------- encoder (inference) ----------------
    h = jnp.maximum(gen[:, 0:HE], 0.0)                          # ReLU(pointwise Conv1d(x))
    pooled = jnp.sum(h, axis=0, keepdims=True) * (1.0 / L)      # mean pool over protein length
    muvar = (jnp.dot(pooled, w_ref[R_HEAD:R_HEAD + HE, :], preferred_element_type=f32)
             + vec[V_BHEAD:V_BHEAD + 1, :])                     # (1, 128): [mu | var_pre | ..]
    mu = muvar[:, 0:ZD]
    var = jax.nn.softplus(muvar[:, ZD:2 * ZD])

    # reparam_trick: z = mu + eps * sqrt(var), eps ~ U[0,1) (torch.rand_like)
    z = mu + eps * jnp.sqrt(var)                                # (1, ZD)

    # ------- cond_mapper + discriminator layer 1 (one fused matmul) -------
    zd = (jnp.dot(z, w_ref[R_ZD:R_ZD + ZD, :], preferred_element_type=f32)
          + vec[V_BZD:V_BZD + 1, :])                            # (1, 128): [cond(L) | hd_pre]
    cond = zd[:, 0:L]                                           # z_upscale (1, L)
    hd = jnp.maximum(zd[:, L:L + HD], 0.0)                      # (1, HD)

    # ---------------- discriminator heads ----------------
    yrc = (jnp.dot(hd, w_ref[R_RC:R_RC + HD, :], preferred_element_type=f32)
           + vec[V_BRC:V_BRC + 1, :])                           # (1, 128): [y_R | y_C_pre]
    y_r = yrc[:, 0:1]
    y_c = jax.nn.sigmoid(yrc[:, 1:2])

    # ------- per-position conditioning columns c[l] and c[l-1] (tiny (L, L) select) -------
    row = jax.lax.broadcasted_iota(jnp.int32, (L, L), 0)
    col = jax.lax.broadcasted_iota(jnp.int32, (L, L), 1)
    c_col = jnp.sum(jnp.where(col == row, cond, 0.0), axis=1, keepdims=True)        # (L, 1)
    cp_col = jnp.sum(jnp.where(col == row - 1, cond, 0.0), axis=1, keepdims=True)   # 0 at l==0

    # ------- gated activation + output projection -------
    # cond-channel rows are zero on the h lanes, so adding to the full 128-lane tile is exact.
    pre = (gen + c_col * vec[V_WC1:V_WC1 + 1, :]
               + cp_col * vec[V_WC0:V_WC0 + 1, :])
    hgen = jnp.tanh(pre[:, HE:HE + HG]) * jax.nn.sigmoid(pre[:, HE + HG:HE + 2 * HG])
    logits = (jnp.dot(hgen, w_ref[R_WO:R_WO + HG, :], preferred_element_type=f32)
              + vec[V_BO:V_BO + 1, :])                          # (L, 128), lanes 0:A valid

    # ------- single lane/sublane-dense store: [logits ; small ; pad] -------
    small = jnp.concatenate(
        [mu, var, z, y_r, y_c, jnp.zeros((1, LANES - 3 * ZD - 2), f32)], axis=1)
    out_ref[...] = jnp.concatenate(
        [logits, small, jnp.zeros((ORB - L - 1, LANES), f32)], axis=0)


# ---------------------------------------------------------------------------
# Parameter construction (deterministic, synthetic) and host-side packing
# ---------------------------------------------------------------------------
def init_raw_params(key):
    ks = jax.random.split(key, 16)
    s = 0.1
    nrm = lambda k, shape: s * jax.random.normal(k, shape, jnp.float32)
    zer = lambda shape: jnp.zeros(shape, jnp.float32)
    return {
        # encoder: pointwise Conv1d(A->HE)+ReLU, mean-pool over L, Linear->mu, Linear+softplus->var
        "wc": nrm(ks[0], (A, HE)), "bc": zer((1, HE)),
        "wmu": nrm(ks[1], (HE, ZD)), "bmu": zer((1, ZD)),
        "wvar": nrm(ks[2], (HE, ZD)), "bvar": zer((1, ZD)),
        # cond_mapper: Linear(z_dim -> protein_len), viewed as (B, 1, L)
        "wz": nrm(ks[3], (ZD, L)), "bz": zer((1, L)),
        # discriminator (decoder_pheno): MLP -> regression head + sigmoid classification head
        "wd1": nrm(ks[4], (ZD, HD)), "bd1": zer((1, HD)),
        "wr": nrm(ks[5], (HD, 1)), "br": zer((1, 1)),
        "wcl": nrm(ks[6], (HD, 1)), "bcl": zer((1, 1)),
        # generator: WaveNet-style gated causal conv (k=2) over [x ; cond], then Conv1d(HG->A)
        "wf1": nrm(ks[7], (A, HG)), "wf0": nrm(ks[8], (A, HG)),
        "wfc1": nrm(ks[9], (1, HG)), "wfc0": nrm(ks[10], (1, HG)), "bf": zer((1, HG)),
        "wg1": nrm(ks[11], (A, HG)), "wg0": nrm(ks[12], (A, HG)),
        "wgc1": nrm(ks[13], (1, HG)), "wgc0": nrm(ks[14], (1, HG)), "bg": zer((1, HG)),
        "wo": nrm(ks[15], (HG, A)), "bo": zer((1, A)),
    }


def pack_params(p):
    """Pack the ~33 tiny parameters into ONE (160, 128) lane-dense, tile-aligned slab."""
    W = jnp.zeros((W_ROWS, LANES), jnp.float32)
    # fused generator/encoder RHS (K = 64: [x | x_prev], each padded to 32 lanes)
    W = W.at[0:A, 0:HE].set(p["wc"])
    W = W.at[0:A, HE:HE + HG].set(p["wf1"])
    W = W.at[0:A, HE + HG:HE + 2 * HG].set(p["wg1"])
    W = W.at[32:32 + A, HE:HE + HG].set(p["wf0"])
    W = W.at[32:32 + A, HE + HG:HE + 2 * HG].set(p["wg0"])
    # encoder heads [Wmu | Wvar]
    W = W.at[R_HEAD:R_HEAD + HE, 0:ZD].set(p["wmu"])
    W = W.at[R_HEAD:R_HEAD + HE, ZD:2 * ZD].set(p["wvar"])
    # generator output projection Wo (padded to 128 lanes)
    W = W.at[R_WO:R_WO + HG, 0:A].set(p["wo"])
    # cond_mapper + discriminator layer 1 [Wz | Wd1]
    W = W.at[R_ZD:R_ZD + ZD, 0:L].set(p["wz"])
    W = W.at[R_ZD:R_ZD + ZD, L:L + HD].set(p["wd1"])
    # discriminator heads [Wr | Wcl]
    W = W.at[R_RC:R_RC + HD, 0:1].set(p["wr"])
    W = W.at[R_RC:R_RC + HD, 1:2].set(p["wcl"])

    # bias / cond-channel rows
    def setrow(w, r, col, v):
        v = v.reshape(-1)
        return w.at[r, col:col + v.shape[0]].set(v)

    W = setrow(W, R_VEC + V_BGEN, 0, p["bc"])
    W = setrow(W, R_VEC + V_BGEN, HE, p["bf"])
    W = setrow(W, R_VEC + V_BGEN, HE + HG, p["bg"])
    W = setrow(W, R_VEC + V_BHEAD, 0, p["bmu"])
    W = setrow(W, R_VEC + V_BHEAD, ZD, p["bvar"])
    W = setrow(W, R_VEC + V_BZD, 0, p["bz"])
    W = setrow(W, R_VEC + V_BZD, L, p["bd1"])
    W = setrow(W, R_VEC + V_BRC, 0, p["br"])
    W = setrow(W, R_VEC + V_BRC, 1, p["bcl"])
    W = setrow(W, R_VEC + V_WC1, HE, p["wfc1"])
    W = setrow(W, R_VEC + V_WC1, HE + HG, p["wgc1"])
    W = setrow(W, R_VEC + V_WC0, HE, p["wfc0"])
    W = setrow(W, R_VEC + V_WC0, HE + HG, p["wgc0"])
    W = setrow(W, R_VEC + V_BO, 0, p["bo"])
    return W


# ---------------------------------------------------------------------------
# Forward wrapper (mirrors SS_ProtWaveVAE.forward)
# ---------------------------------------------------------------------------
@jax.jit
def forward(W, x, eps):
    # x: (B, L, A) one-hot, eps: (B, ZD) uniform noise for the reparameterization trick
    x2d = x.reshape(B * L, A)
    xin = jnp.zeros((B * L, LANES), jnp.float32)
    xin = xin.at[:, 0:A].set(x2d)
    xin = xin.at[0::L, EPS_COL:EPS_COL + ZD].set(eps)     # eps[b] lives in row b*L

    out = pl.pallas_call(
        fused_kernel,
        out_shape=jax.ShapeDtypeStruct((B * ORB, LANES), jnp.float32),
        grid=(B,),
        in_specs=[
            pl.BlockSpec((L, LANES), lambda b: (b, 0)),       # per-protein input block
            pl.BlockSpec((W_ROWS, LANES), lambda b: (0, 0)),  # constant weight slab
        ],
        out_specs=pl.BlockSpec((ORB, LANES), lambda b: (b, 0)),
        compiler_params=pltpu.CompilerParams(dimension_semantics=("parallel",)),
    )(xin, W)

    out3 = out.reshape(B, ORB, LANES)
    # logits_xrc --> (batch_size, protein_len, aa_labels) (= .permute(0, 2, 1) in PyTorch)
    logits_xrc = out3[:, :L, :A]
    small = out3[:, L, :]
    z_mu = small[:, 0:ZD]
    z_var = small[:, ZD:2 * ZD]
    z = small[:, 2 * ZD:3 * ZD]
    y_pred_R = small[:, 3 * ZD:3 * ZD + 1]
    y_pred_C = small[:, 3 * ZD + 1:3 * ZD + 2]
    return logits_xrc, y_pred_R, y_pred_C, z, z_mu, z_var


# ---------------------------------------------------------------------------
# Pure-JAX reference of the same forward pass (for correctness checking)
# ---------------------------------------------------------------------------
def reference_forward(p, x, eps):
    hi = jax.lax.Precision.HIGHEST
    dot = lambda a, b: jnp.dot(a, b, precision=hi)
    x2d = x.reshape(B * L, A)
    h = jnp.maximum(dot(x2d, p["wc"]) + p["bc"], 0.0)
    pooled = h.reshape(B, L, HE).mean(axis=1)
    mu = dot(pooled, p["wmu"]) + p["bmu"]
    var = jax.nn.softplus(dot(pooled, p["wvar"]) + p["bvar"])
    z = mu + eps * jnp.sqrt(var)
    cond = dot(z, p["wz"]) + p["bz"]                                  # z_upscale (B, L)
    hd = jnp.maximum(dot(z, p["wd1"]) + p["bd1"], 0.0)
    y_r = dot(hd, p["wr"]) + p["br"]
    y_c = jax.nn.sigmoid(dot(hd, p["wcl"]) + p["bcl"])
    xp = jnp.pad(x, ((0, 0), (1, 0), (0, 0)))[:, :L, :].reshape(B * L, A)
    cp = jnp.pad(cond, ((0, 0), (1, 0)))[:, :L]
    c_col, cp_col = cond.reshape(B * L, 1), cp.reshape(B * L, 1)
    pre_f = (dot(x2d, p["wf1"]) + dot(xp, p["wf0"])
             + c_col * p["wfc1"] + cp_col * p["wfc0"] + p["bf"])
    pre_g = (dot(x2d, p["wg1"]) + dot(xp, p["wg0"])
             + c_col * p["wgc1"] + cp_col * p["wgc0"] + p["bg"])
    hg = jnp.tanh(pre_f) * jax.nn.sigmoid(pre_g)
    logits = (dot(hg, p["wo"]) + p["bo"]).reshape(B, L, A)
    return logits, y_r, y_c, z, mu, var


if __name__ == "__main__":
    key = jax.random.PRNGKey(0)
    k_param, k_aa, k_eps = jax.random.split(key, 3)

    raw_params = init_raw_params(k_param)
    W = pack_params(raw_params)

    # one-hot amino-acid input: x --> (batch_size, protein_len, aa_labels)
    aa_idx = jax.random.randint(k_aa, (B, L), 0, A)
    x = jax.nn.one_hot(aa_idx, A, dtype=jnp.float32)
    # reparameterization noise: torch.rand_like -> uniform [0, 1)
    eps = jax.random.uniform(k_eps, (B, ZD), dtype=jnp.float32)

    outs = jax.block_until_ready(forward(W, x, eps))
    logits_xrc, y_pred_R, y_pred_C, z, z_mu, z_var = outs

    # shape / sanity checks
    assert logits_xrc.shape == (B, L, A)
    assert y_pred_R.shape == (B, 1) and y_pred_C.shape == (B, 1)
    assert z.shape == (B, ZD) and z_mu.shape == (B, ZD) and z_var.shape == (B, ZD)
    assert bool(jnp.all(jnp.isfinite(logits_xrc)))
    assert bool(jnp.all((y_pred_C >= 0.0) & (y_pred_C <= 1.0)))

    # numerical check against the pure-JAX reference
    ref = reference_forward(raw_params, x, eps)
    for got, want in zip(outs, ref):
        assert got.shape == want.shape
        assert bool(jnp.allclose(got, want, rtol=1e-3, atol=1e-3)), (
            "max abs err = %e" % float(jnp.max(jnp.abs(got - want))))

    print("KERNEL_OK")
</pallas_src>

<mosaic_0001>
module attributes {stable_mosaic.version = 11 : i64} {
  func.func @fused_kernel(%arg0: i32, %arg1: memref<8x128xf32, #tpu.memory_space<vmem>>, %arg2: memref<160x128xf32, #tpu.memory_space<vmem>>, %arg3: memref<16x128xf32, #tpu.memory_space<vmem>>) attributes {dimension_semantics = [#tpu.dimension_semantics<parallel>], iteration_bounds = array<i64: 2>, scalar_prefetch = 0 : i64, scratch_operands = 0 : i64, tpu.core_type = #tpu.core_type<tc>, window_params = [{transform_indices = @transform_0, window_bounds = array<i64: 8, 128>}, {pipeline_mode = #tpu.pipeline_mode<synchronous>, transform_indices = @transform_1, window_bounds = array<i64: 160, 128>}, {transform_indices = @transform_2, window_bounds = array<i64: 16, 128>}]} {
    %c0 = arith.constant 0 : index
    %c0_0 = arith.constant 0 : index
    %0 = vector.load %arg1[%c0, %c0_0] : memref<8x128xf32, #tpu.memory_space<vmem>>, vector<8x128xf32>
    %1 = vector.extract_strided_slice %0 {offsets = [0, 0], sizes = [8, 32], strides = [1, 1]} : vector<8x128xf32> to vector<8x32xf32>
    %2 = vector.extract_strided_slice %0 {offsets = [0, 64], sizes = [1, 6], strides = [1, 1]} : vector<8x128xf32> to vector<1x6xf32>
    %c152 = arith.constant 152 : index
    %c0_1 = arith.constant 0 : index
    %3 = vector.load %arg2[%c152, %c0_1] : memref<160x128xf32, #tpu.memory_space<vmem>>, vector<8x128xf32>
    %cst = arith.constant 0.000000e+00 : f32
    %4 = vector.broadcast %cst : f32 to vector<1x32xf32>
    %5 = vector.extract_strided_slice %1 {offsets = [0, 0], sizes = [7, 32], strides = [1, 1]} : vector<8x32xf32> to vector<7x32xf32>
    %6 = tpu.concatenate %4, %5 in 0 : vector<1x32xf32>, vector<7x32xf32> -> vector<8x32xf32>
    %7 = tpu.concatenate %1, %6 in 1 : vector<8x32xf32>, vector<8x32xf32> -> vector<8x64xf32>
    %c0_2 = arith.constant 0 : index
    %c0_3 = arith.constant 0 : index
    %8 = vector.load %arg2[%c0_2, %c0_3] : memref<160x128xf32, #tpu.memory_space<vmem>>, vector<64x128xf32>
    %cst_4 = arith.constant dense<0.000000e+00> : vector<8x128xf32>
    %9 = tpu.matmul %7, %8, %cst_4 {dimension_numbers = #tpu.dot_dimension_numbers<[1], [0], [0], [1], [0, 0, 1, 1], [], []>} : vector<8x64xf32>, vector<64x128xf32>, vector<8x128xf32> -> vector<8x128xf32>
    %10 = vector.extract_strided_slice %3 {offsets = [0, 0], sizes = [1, 128], strides = [1, 1]} : vector<8x128xf32> to vector<1x128xf32>
    %11 = vector.broadcast %10 : vector<1x128xf32> to vector<8x128xf32>
    %12 = arith.addf %9, %11 : vector<8x128xf32>
    %13 = vector.extract_strided_slice %12 {offsets = [0, 0], sizes = [8, 32], strides = [1, 1]} : vector<8x128xf32> to vector<8x32xf32>
    %cst_5 = arith.constant 0.000000e+00 : f32
    %14 = vector.broadcast %cst_5 : f32 to vector<8x32xf32>
    %15 = arith.maximumf %13, %14 : vector<8x32xf32>
    %cst_6 = arith.constant dense<0.000000e+00> : vector<32xf32>
    %16 = vector.multi_reduction <add>, %15, %cst_6 [0] : vector<8x32xf32> to vector<32xf32>
    %17 = vector.shape_cast %16 : vector<32xf32> to vector<1x32xf32>
    %cst_7 = arith.constant 1.250000e-01 : f32
    %18 = vector.broadcast %cst_7 : f32 to vector<1x32xf32>
    %19 = arith.mulf %17, %18 : vector<1x32xf32>
    %c64 = arith.constant 64 : index
    %c0_8 = arith.constant 0 : index
    %20 = vector.load %arg2[%c64, %c0_8] : memref<160x128xf32, #tpu.memory_space<vmem>>, vector<32x128xf32>
    %cst_9 = arith.constant dense<0.000000e+00> : vector<1x128xf32>
    %21 = tpu.matmul %19, %20, %cst_9 {dimension_numbers = #tpu.dot_dimension_numbers<[1], [0], [0], [1], [0, 0, 1, 1], [], []>} : vector<1x32xf32>, vector<32x128xf32>, vector<1x128xf32> -> vector<1x128xf32>
    %22 = vector.extract_strided_slice %3 {offsets = [1, 0], sizes = [1, 128], strides = [1, 1]} : vector<8x128xf32> to vector<1x128xf32>
    %23 = arith.addf %21, %22 : vector<1x128xf32>
    %24 = vector.extract_strided_slice %23 {offsets = [0, 0], sizes = [1, 6], strides = [1, 1]} : vector<1x128xf32> to vector<1x6xf32>
    %25 = vector.extract_strided_slice %23 {offsets = [0, 6], sizes = [1, 6], strides = [1, 1]} : vector<1x128xf32> to vector<1x6xf32>
    %cst_10 = arith.constant 0.000000e+00 : f32
    %26 = vector.broadcast %cst_10 : f32 to vector<1x6xf32>
    %27 = arith.maximumf %25, %26 : vector<1x6xf32>
    %28 = vector.broadcast %cst_10 : f32 to vector<1x6xf32>
    %29 = arith.subf %25, %28 : vector<1x6xf32>
    %30 = arith.cmpf one, %29, %29 : vector<1x6xf32>
    %31 = vector.broadcast %cst_10 : f32 to vector<1x6xf32>
    %32 = arith.addf %25, %31 : vector<1x6xf32>
    %33 = math.absf %29 : vector<1x6xf32>
    %cst_11 = arith.constant 0.000000e+00 : f32
    %34 = vector.broadcast %cst_11 : f32 to vector<1x6xf32>
    %35 = arith.subf %34, %33 : vector<1x6xf32>
    %36 = math.exp %35 : vector<1x6xf32>
    %37 = math.log1p %36 : vector<1x6xf32>
    %38 = arith.addf %27, %37 : vector<1x6xf32>
    %39 = arith.select %30, %32, %38 : vector<1x6xi1>, vector<1x6xf32>
    %40 = math.sqrt %39 : vector<1x6xf32>
    %41 = arith.mulf %2, %40 : vector<1x6xf32>
    %42 = arith.addf %24, %41 : vector<1x6xf32>
    %c128 = arith.constant 128 : index
    %c0_12 = arith.constant 0 : index
    %43 = vector.load %arg2[%c128, %c0_12] : memref<160x128xf32, #tpu.memory_space<vmem>>, vector<6x128xf32>
    %cst_13 = arith.constant dense<0.000000e+00> : vector<1x128xf32>
    %44 = tpu.matmul %42, %43, %cst_13 {dimension_numbers = #tpu.dot_dimension_numbers<[1], [0], [0], [1], [0, 0, 1, 1], [], []>} : vector<1x6xf32>, vector<6x128xf32>, vector<1x128xf32> -> vector<1x128xf32>
    %45 = vector.extract_strided_slice %3 {offsets = [2, 0], sizes = [1, 128], strides = [1, 1]} : vector<8x128xf32> to vector<1x128xf32>
    %46 = arith.addf %44, %45 : vector<1x128xf32>
    %47 = vector.extract_strided_slice %46 {offsets = [0, 0], sizes = [1, 8], strides = [1, 1]} : vector<1x128xf32> to vector<1x8xf32>
    %48 = vector.extract_strided_slice %46 {offsets = [0, 8], sizes = [1, 16], strides = [1, 1]} : vector<1x128xf32> to vector<1x16xf32>
    %cst_14 = arith.constant 0.000000e+00 : f32
    %49 = vector.broadcast %cst_14 : f32 to vector<1x16xf32>
    %50 = arith.maximumf %48, %49 : vector<1x16xf32>
    %c136 = arith.constant 136 : index
    %c0_15 = arith.constant 0 : index
    %51 = vector.load %arg2[%c136, %c0_15] : memref<160x128xf32, #tpu.memory_space<vmem>>, vector<16x128xf32>
    %cst_16 = arith.constant dense<0.000000e+00> : vector<1x128xf32>
    %52 = tpu.matmul %50, %51, %cst_16 {dimension_numbers = #tpu.dot_dimension_numbers<[1], [0], [0], [1], [0, 0, 1, 1], [], []>} : vector<1x16xf32>, vector<16x128xf32>, vector<1x128xf32> -> vector<1x128xf32>
    %53 = vector.extract_strided_slice %3 {offsets = [3, 0], sizes = [1, 128], strides = [1, 1]} : vector<8x128xf32> to vector<1x128xf32>
    %54 = arith.addf %52, %53 : vector<1x128xf32>
    %55 = vector.extract_strided_slice %54 {offsets = [0, 0], sizes = [1, 1], strides = [1, 1]} : vector<1x128xf32> to vector<1x1xf32>
    %56 = vector.extract_strided_slice %54 {offsets = [0, 1], sizes = [1, 1], strides = [1, 1]} : vector<1x128xf32> to vector<1x1xf32>
    %57 = arith.negf %56 : vector<1x1xf32>
    %58 = math.exp %57 : vector<1x1xf32>
    %cst_17 = arith.constant 1.000000e+00 : f32
    %59 = vector.broadcast %cst_17 : f32 to vector<1x1xf32>
    %60 = arith.addf %59, %58 : vector<1x1xf32>
    %61 = arith.divf %59, %60 : vector<1x1xf32>
    %62 = tpu.iota {dimensions = array<i32: 0>} : vector<8x8xi32>
    %63 = tpu.iota {dimensions = array<i32: 1>} : vector<8x8xi32>
    %64 = arith.cmpi eq, %63, %62 : vector<8x8xi32>
    %cst_18 = arith.constant 0.000000e+00 : f32
    %65 = vector.shape_cast %47 : vector<1x8xf32> to vector<1x8xf32>
    %66 = vector.broadcast %65 : vector<1x8xf32> to vector<8x8xf32>
    %67 = vector.broadcast %cst_18 : f32 to vector<8x8xf32>
    %68 = arith.select %64, %66, %67 : vector<8x8xi1>, vector<8x8xf32>
    %cst_19 = arith.constant dense<0.000000e+00> : vector<8xf32>
    %69 = vector.multi_reduction <add>, %68, %cst_19 [1] : vector<8x8xf32> to vector<8xf32>
    %70 = vector.shape_cast %69 : vector<8xf32> to vector<8x1xf32>
    %c1_i32 = arith.constant 1 : i32
    %71 = vector.broadcast %c1_i32 : i32 to vector<8x8xi32>
    %72 = arith.subi %62, %71 : vector<8x8xi32>
    %73 = arith.cmpi eq, %63, %72 : vector<8x8xi32>
    %cst_20 = arith.constant 0.000000e+00 : f32
    %74 = vector.shape_cast %47 : vector<1x8xf32> to vector<1x8xf32>
    %75 = vector.broadcast %74 : vector<1x8xf32> to vector<8x8xf32>
    %76 = vector.broadcast %cst_20 : f32 to vector<8x8xf32>
    %77 = arith.select %73, %75, %76 : vector<8x8xi1>, vector<8x8xf32>
    %cst_21 = arith.constant dense<0.000000e+00> : vector<8xf32>
    %78 = vector.multi_reduction <add>, %77, %cst_21 [1] : vector<8x8xf32> to vector<8xf32>
    %79 = vector.shape_cast %78 : vector<8xf32> to vector<8x1xf32>
    %80 = vector.extract_strided_slice %3 {offsets = [4, 0], sizes = [1, 128], strides = [1, 1]} : vector<8x128xf32> to vector<1x128xf32>
    %81 = vector.broadcast %70 : vector<8x1xf32> to vector<8x128xf32>
    %82 = vector.broadcast %80 : vector<1x128xf32> to vector<8x128xf32>
    %83 = arith.mulf %81, %82 : vector<8x128xf32>
    %84 = arith.addf %12, %83 : vector<8x128xf32>
    %85 = vector.extract_strided_slice %3 {offsets = [5, 0], sizes = [1, 128], strides = [1, 1]} : vector<8x128xf32> to vector<1x128xf32>
    %86 = vector.broadcast %79 : vector<8x1xf32> to vector<8x128xf32>
    %87 = vector.broadcast %85 : vector<1x128xf32> to vector<8x128xf32>
    %88 = arith.mulf %86, %87 : vector<8x128xf32>
    %89 = arith.addf %84, %88 : vector<8x128xf32>
    %90 = vector.extract_strided_slice %89 {offsets = [0, 32], sizes = [8, 32], strides = [1, 1]} : vector<8x128xf32> to vector<8x32xf32>
    %91 = math.tanh %90 : vector<8x32xf32>
    %92 = vector.extract_strided_slice %89 {offsets = [0, 64], sizes = [8, 32], strides = [1, 1]} : vector<8x128xf32> to vector<8x32xf32>
    %93 = arith.negf %92 : vector<8x32xf32>
    %94 = math.exp %93 : vector<8x32xf32>
    %cst_22 = arith.constant 1.000000e+00 : f32
    %95 = vector.broadcast %cst_22 : f32 to vector<8x32xf32>
    %96 = arith.addf %95, %94 : vector<8x32xf32>
    %97 = arith.divf %95, %96 : vector<8x32xf32>
    %98 = arith.mulf %91, %97 : vector<8x32xf32>
    %c96 = arith.constant 96 : index
    %c0_23 = arith.constant 0 : index
    %99 = vector.load %arg2[%c96, %c0_23] : memref<160x128xf32, #tpu.memory_space<vmem>>, vector<32x128xf32>
    %cst_24 = arith.constant dense<0.000000e+00> : vector<8x128xf32>
    %100 = tpu.matmul %98, %99, %cst_24 {dimension_numbers = #tpu.dot_dimension_numbers<[1], [0], [0], [1], [0, 0, 1, 1], [], []>} : vector<8x32xf32>, vector<32x128xf32>, vector<8x128xf32> -> vector<8x128xf32>
    %101 = vector.extract_strided_slice %3 {offsets = [6, 0], sizes = [1, 128], strides = [1, 1]} : vector<8x128xf32> to vector<1x128xf32>
    %102 = vector.broadcast %101 : vector<1x128xf32> to vector<8x128xf32>
    %103 = arith.addf %100, %102 : vector<8x128xf32>
    %cst_25 = arith.constant 0.000000e+00 : f32
    %104 = vector.broadcast %cst_25 : f32 to vector<1x108xf32>
    %105 = tpu.concatenate %24, %39, %42, %55, %61, %104 in 1 : vector<1x6xf32>, vector<1x6xf32>, vector<1x6xf32>, vector<1x1xf32>, vector<1x1xf32>, vector<1x108xf32> -> vector<1x128xf32>
    %cst_26 = arith.constant 0.000000e+00 : f32
    %106 = vector.broadcast %cst_26 : f32 to vector<7x128xf32>
    %107 = tpu.concatenate %103, %105, %106 in 0 : vector<8x128xf32>, vector<1x128xf32>, vector<7x128xf32> -> vector<16x128xf32>
    %c0_27 = arith.constant 0 : index
    %c0_28 = arith.constant 0 : index
    %108 = vector.load %arg3[%c0_27, %c0_28] : memref<16x128xf32, #tpu.memory_space<vmem>>, vector<16x128xf32>
    tpu.vector_store %arg3[%c0_27, %c0_28], %107 {strides = array<i32>} : memref<16x128xf32, #tpu.memory_space<vmem>>, vector<16x128xf32>,
    return
  }
  func.func @transform_0(%arg0: i32) -> (i32, i32) {
    %c0_i32 = arith.constant 0 : i32
    %c0_i32_0 = arith.constant 0 : i32
    return %arg0, %c0_i32 : i32, i32
  }
  func.func @transform_1(%arg0: i32) -> (i32, i32) {
    %c0_i32 = arith.constant 0 : i32
    %c0_i32_0 = arith.constant 0 : i32
    %c0_i32_1 = arith.constant 0 : i32
    return %c0_i32, %c0_i32_0 : i32, i32
  }
  func.func @transform_2(%arg0: i32) -> (i32, i32) {
    %c0_i32 = arith.constant 0 : i32
    %c0_i32_0 = arith.constant 0 : i32
    return %arg0, %c0_i32 : i32, i32
  }
}

</mosaic_0001>

<llo_original>
// kernel: forward.1
$region0: #{forward.1}
  #allocation0 [shape = 'u32[]', space=smem, size = 0x4, offset = 0x4, fixed_abs, tag = 'smem constant byte address 0x4 - core index']
  #allocation1 [shape = 'u32[144,128]{1,0:T(1,128)}', space=vmem, size = 0x12000, scoped, tag = 'internal scratch']
  %s0 = inlined_call_operand.vmem [shape: f32[16,128], index: 0, kind: input, shape index: {}]
  %s1 = inlined_call_operand.vmem [shape: f32[160,128], index: 1, kind: input, shape index: {}]
  %s2 = inlined_call_operand.vmem [shape: f32[32,128], index: 2, kind: output, shape index: {}]
  %s3 = sld [smem:[#allocation0]]
  $region41: #{forward.1} parent=0
    _
  %s5 = ssub.s32 1, %s3
  %s6 = scalar_select 0, %s5, %s3
  loop: start=0, step=1, limit=4
  $region2: #{forward.1} parent=0 // loop_pre_header
    _
  $region3: #{forward.1} parent=0 // loop_header
    %s8 = sphi 0, %s12
    %p9 = scmp.ge.s32.totalorder %s8, 4
    %s18 = sphi 0, %s20
    %s21 = sphi 0, %s18
    %s22 = sphi 0, %s21
    %s38 = sphi 0, %s22
    %s42 = sphi 0, %s42
    %s44 = sphi 0, %s42
    %s45 = sphi 0, %s44
    %s59 = sphi 0, %s45
    %s65 = sphi 0, %s67
    %s68 = sphi 0, %s65
    %s69 = sphi 0, %s68
    %s85 = sphi 0, %s69
  $region4: #{forward.1} parent=0 // loop_header_branch
    %11 = sbr.rel (%p9) target = $region8
  $region5: #{forward.1} parent=0 // loop_body
    %s13 = ssub.s32 %s8, 1
    %s14 = ssub.s32 %s8, 2
    %s15 = sadd.s32 %s8, 1
    %s16 = ssub.s32 %s8, %s15
    %p17 = scmp.eq.s32.totalorder %s16, 0
    %s19 = sadd.s32 %s18, 1
    %s20 = scalar_select %p17, %s18, %s19
    %p23 = pneg %p17
    %p24 = scmp.eq.s32.totalorder %s8, 1
    %p25 = por %p23, %p24
    %p26 = scmp.ne.s32.totalorder %s18, %s21
    %p27 = scmp.eq.s32.totalorder %s8, 0
    %p28 = por %p26, %p27
    %p29 = scmp.ne.s32.totalorder %s18, %s21
    %p30 = scmp.eq.s32.totalorder %s13, 1
    %p31 = por %p29, %p30
    %p32 = scmp.ne.s32.totalorder %s21, %s22
    %p33 = scmp.eq.s32.totalorder %s13, 0
    %p34 = por %p32, %p33
    %p35 = scmp.ne.s32.totalorder %s21, %s22
    %p36 = scmp.eq.s32.totalorder %s14, 1
    %p37 = por %p35, %p36
    %p39 = scmp.ne.s32.totalorder %s22, %s38
    %p40 = scmp.eq.s32.totalorder %s14, 0
    %p41 = por %p39, %p40
    %s43 = sadd.s32 %s42, 1
    %p46 = scmp.eq.s32.totalorder %s8, 1
    %p47 = scmp.ne.s32.totalorder %s42, %s44
    %p48 = scmp.eq.s32.totalorder %s8, 0
    %p49 = por %p47, %p48
    %p50 = scmp.ne.s32.totalorder %s42, %s44
    %p51 = scmp.eq.s32.totalorder %s13, 1
    %p52 = por %p50, %p51
    %p53 = scmp.ne.s32.totalorder %s44, %s45
    %p54 = scmp.eq.s32.totalorder %s13, 0
    %p55 = por %p53, %p54
    %p56 = scmp.ne.s32.totalorder %s44, %s45
    %p57 = scmp.eq.s32.totalorder %s14, 1
    %p58 = por %p56, %p57
    %p60 = scmp.ne.s32.totalorder %s45, %s59
    %p61 = scmp.eq.s32.totalorder %s14, 0
    %p62 = por %p60, %p61
    %s63 = ssub.s32 %s8, %s15
    %p64 = scmp.eq.s32.totalorder %s63, 0
    %s66 = sadd.s32 %s65, 1
    %s67 = scalar_select %p64, %s65, %s66
    %p70 = pneg %p64
    %p71 = scmp.eq.s32.totalorder %s8, 1
    %p72 = por %p70, %p71
    %p73 = scmp.ne.s32.totalorder %s65, %s68
    %p74 = scmp.eq.s32.totalorder %s8, 0
    %p75 = por %p73, %p74
    %p76 = scmp.ne.s32.totalorder %s65, %s68
    %p77 = scmp.eq.s32.totalorder %s13, 1
    %p78 = por %p76, %p77
    %p79 = scmp.ne.s32.totalorder %s68, %s69
    %p80 = scmp.eq.s32.totalorder %s13, 0
    %p81 = por %p79, %p80
    %p82 = scmp.ne.s32.totalorder %s68, %s69
    %p83 = scmp.eq.s32.totalorder %s14, 1
    %p84 = por %p82, %p83
    %p86 = scmp.ne.s32.totalorder %s69, %s85
    %p87 = scmp.eq.s32.totalorder %s14, 0
    %p88 = por %p86, %p87
    %p89 = scmp.le.s32.totalorder 1, %s8
    %p90 = scmp.lt.s32.totalorder %s8, 3
    %p91 = pnand %p89, %p90
    %p92 = pneg %p91
    // Predicated region
    $region9: #{forward.1} parent=5 // pred_check
      _
    $region10: #{forward.1} parent=5 // pred_check_branch
      %94 = sbr.rel (%p91) target = $region12
    $region11: #{forward.1} parent=5 // pred_region
      %s95 = ssub.s32 %s8, 1
      // Predicated region
      $region13: #{forward.1} parent=11 // pred_check
        %p96 = pneg %p55
      $region14: #{forward.1} parent=11 // pred_check_branch
        %98 = sbr.rel (%p96) target = $region16
      $region15: #{forward.1} parent=11 // pred_region
        _
      $region16: #{forward.1} parent=11 // pred_fallthru
        _
    $region12: #{forward.1} parent=5 // pred_fallthru
      _
    %p99 = scmp.lt.s32.totalorder %s8, 2
    // Predicated region
    $region17: #{forward.1} parent=5 // pred_check
      %p100 = pneg %p99
    $region18: #{forward.1} parent=5 // pred_check_branch
      %102 = sbr.rel (%p100) target = $region20
    $region19: #{forward.1} parent=5 // pred_region
      // Predicated region
      $region21: #{forward.1} parent=19 // pred_check
        %p103 = pneg %p28
      $region22: #{forward.1} parent=19 // pred_check_branch
        %105 = sbr.rel (%p103) target = $region24
      $region23: #{forward.1} parent=19 // pred_region
        %p106 = scmp.lt.s32.totalorder %s8, 1
        %s107 = scalar_select %p106, %s8, 1
        %s108 = smul.addr %s107, 8
        %s109 = scalar_lea.vmem %s0, %s108
      $region24: #{forward.1} parent=19 // pred_fallthru
        _
    $region20: #{forward.1} parent=5 // pred_fallthru
      _
    %p110 = scmp.le.s32.totalorder 1, %s8
    %p111 = scmp.lt.s32.totalorder %s8, 3
    %p112 = pnand %p110, %p111
    %p113 = pneg %p112
    // Predicated region
    $region25: #{forward.1} parent=5 // pred_check
      _
    $region26: #{forward.1} parent=5 // pred_check_branch
      %115 = sbr.rel (%p112) target = $region28
    $region27: #{forward.1} parent=5 // pred_region
      %s116 = ssub.s32 %s8, 1
      %p117 = scmp.lt.s32.totalorder %s13, 1
      %s118 = scalar_select %p117, %s13, 1
      %s119 = smul.addr %s118, 8
      %s120 = scalar_lea.vmem %s0, %s119
      %p121 = pneg %p34
      %p122 = pneg %p31
      %p123 = pneg %p55
      %p124 = pneg %p52
      %p125 = pneg %p81
      %p126 = pneg %p78
      %s127 = smul.u32 2, %s13
      %p128 = scmp.lt.s32.totalorder %s127, 3
      %s129 = scalar_select %p128, %s127, 3
      %s130 = smul.addr %s129, 8
      %s131 = scalar_lea.vmem %s2, %s130
      %p132 = scmp.lt.s32.totalorder %s13, 1
      %s133 = scalar_select %p132, %s13, 1
      %s134 = smul.addr %s133, 8
      %s135 = scalar_lea.vmem %s0, %s134
      %s136 = smul.u32 2, %s13
      %p137 = scmp.lt.s32.totalorder %s136, 3
      %s138 = scalar_select %p137, %s136, 3
      %s139 = smul.addr %s138, 8
      %s140 = scalar_lea.vmem %s2, %s139
      %s141 = smul.u32 2, %s13
      %v142 = vld [vmem:[%s135] sm:$0xff]
      %v143 = vld [vmem:[%s1 + $0x98] sm:$0xff]
      %v145 = vrot.slane %v142, 7
      %vm147 = vcmask 1040384
      %v148 = vsel %vm147, 0.0, %v145
      %150 = vrot.lane.b32.xlu0 %v148, 32
      %v151 = vpop.permute.xlu0 %150
      %vm153 = vcmask 261120
      %v154 = vsel %vm153, %v142, %v151
      %v155 = vld [vmem:[%s1] sm:$0xff]
      %v156 = vld [vmem:[%s1 + $0x8] sm:$0xff]
      %v157 = vld [vmem:[%s1 + $0x10] sm:$0xff]
      %v158 = vld [vmem:[%s1 + $0x18] sm:$0xff]
      %v159 = vld [vmem:[%s1 + $0x20] sm:$0xff]
      %v160 = vld [vmem:[%s1 + $0x28] sm:$0xff]
      %v161 = vld [vmem:[%s1 + $0x30] sm:$0xff]
      %v162 = vld [vmem:[%s1 + $0x38] sm:$0xff]
      %v163 = vlaneseq
      %v164 = vshrl.u32 %v163, 7
      %v165 = vsub.s32 0, %v164
      %v166 = vrot.slane %v143, %v165
      %vm167 = vcmask 523264
      %v169 = vsel %vm167, %v154, 0
      %171 = vmatprep.subr.mxu0 0.0
      %172 = vmatpush1.msra.mxu0 %v155
      %173 = vmatprep.subr.mxu0 0.0
      %174 = vmatpush1.msra.mxu0 %v156
      %175 = vmatprep.subr.mxu0 0.0
      %176 = vmatpush1.msra.mxu0 %v157
      %177 = vmatprep.subr.mxu0 0.0
      %178 = vmatpush1.msra.mxu0 %v158
      %179 = vmatprep.subr.mxu0 0.0
      %180 = vmatpush1.msra.mxu0 %v159
      %181 = vmatprep.subr.mxu0 0.0
      %182 = vmatpush1.msra.mxu0 %v160
      %183 = vmatprep.subr.mxu0 0.0
      %184 = vmatpush1.msra.mxu0 %v161
      %185 = vmatprep.subr.mxu0 0.0
      %186 = vmatpush1.msra.mxu0 %v162
      %187 = vmatprep.subr.mxu0 0.0
      %188 = vmatpush1.msra.mxu0 0.0
      %189 = vmatprep.subr.mxu0 0.0
      %190 = vmatpush1.msra.mxu0 0.0
      %191 = vmatprep.subr.mxu0 0.0
      %192 = vmatpush1.msra.mxu0 0.0
      %193 = vmatprep.subr.mxu0 0.0
      %194 = vmatpush1.msra.mxu0 0.0
      %195 = vmatprep.subr.mxu0 0.0
      %196 = vmatpush1.msra.mxu0 0.0
      %197 = vmatprep.subr.mxu0 0.0
      %198 = vmatpush1.msra.mxu0 0.0
      %199 = vmatprep.subr.mxu0 0.0
      %200 = vmatpush1.msra.mxu0 0.0
      %201 = vmatprep.subr.mxu0 0.0
      %202 = vmatpush1.msra.mxu0 0.0
      %203 = vmatprep.subr.mxu0 0.0
      %204 = vmatpush1.msra.mxu0 0.0
      %205 = vmatprep.subr.mxu0 0.0
      %206 = vmatpush1.msra.mxu0 0.0
      %207 = vmatprep.subr.mxu0 0.0
      %208 = vmatpush1.msra.mxu0 0.0
      %209 = vmatprep.subr.mxu0 0.0
      %210 = vmatpush1.msra.mxu0 0.0
      %211 = vmatprep.subr.mxu0 0.0
      %212 = vmatpush1.msra.mxu0 0.0
      %213 = vmatprep.subr.mxu0 0.0
      %214 = vmatpush1.msra.mxu0 0.0
      %215 = vmatprep.subr.mxu0 0.0
      %216 = vmatpush1.msra.mxu0 0.0
      %217 = vmatprep.subr.mxu0 0.0
      %218 = vmatpush1.msra.mxu0 0.0
      %219 = vmatprep.subr.mxu0 0.0
      %220 = vmatpush1.msra.mxu0 0.0
      %221 = vmatprep.subr.mxu0 0.0
      %222 = vmatpush1.msra.mxu0 0.0
      %223 = vmatprep.subr.mxu0 0.0
      %224 = vmatpush1.msra.mxu0 0.0
      %225 = vmatprep.subr.mxu0 0.0
      %226 = vmatpush1.msra.mxu0 0.0
      %227 = vmatprep.subr.mxu0 0.0
      %228 = vmatpush1.msra.mxu0 0.0
      %229 = vmatprep.subr.mxu0 0.0
      %230 = vmatpush1.msra.mxu0 0.0
      %231 = vmatprep.subr.mxu0 0.0
      %232 = vmatpush1.msra.mxu0 0.0
      %233 = vmatprep.subr.mxu0 0.0
      %234 = vmatpush1.msra.mxu0 0.0
      %235 = vmatprep.mubr.f32.mxu0 0.0
      %236 = vmatmul.mubr.f32.gmra.mrb[0].mxu0 %v169
      %v237 = vpop.f32.mrb[0].mxu0
      %v238 = vadd.f32 %v166, %v237
      %v239 = vpop.f32.mrb[0].mxu0
      %240 = vdwg.mxu0
      %v241 = vmax.f32 %v238, 0.0
      %v242 = vsel %vm153, %v241, 0.0
      %v243 = vrot.slane %v242, 4
      %v244 = vadd.f32 %v242, %v243
      %v245 = vrot.slane %v244, 2
      %v246 = vadd.f32 %v244, %v245
      %v247 = vrot.slane %v246, 1
      %v248 = vadd.f32 %v246, %v247
      %v249 = vmul.f32 %v248, 0.125
      %v250 = vld [vmem:[%s1 + $0x40] sm:$0xff]
      %v251 = vld [vmem:[%s1 + $0x48] sm:$0xff]
      %v252 = vld [vmem:[%s1 + $0x50] sm:$0xff]
      %v253 = vld [vmem:[%s1 + $0x58] sm:$0xff]
      %v255 = vrot.slane %v143, 1
      %v258 = vsel %vm153, %v249, 0
      %260 = vmatprep.subr.mxu0 0.0
      %261 = vmatpush1.msra.mxu0 %v250
      %262 = vmatprep.subr.mxu0 0.0
      %263 = vmatpush1.msra.mxu0 %v251
      %264 = vmatprep.subr.mxu0 0.0
      %265 = vmatpush1.msra.mxu0 %v252
      %266 = vmatprep.subr.mxu0 0.0
      %267 = vmatpush1.msra.mxu0 %v253
      %268 = vmatprep.subr.mxu0 0.0
      %269 = vmatpush1.msra.mxu0 0.0
      %270 = vmatprep.subr.mxu0 0.0
      %271 = vmatpush1.msra.mxu0 0.0
      %272 = vmatprep.subr.mxu0 0.0
      %273 = vmatpush1.msra.mxu0 0.0
      %274 = vmatprep.subr.mxu0 0.0
      %275 = vmatpush1.msra.mxu0 0.0
      %276 = vmatprep.subr.mxu0 0.0
      %277 = vmatpush1.msra.mxu0 0.0
      %278 = vmatprep.subr.mxu0 0.0
      %279 = vmatpush1.msra.mxu0 0.0
      %280 = vmatprep.subr.mxu0 0.0
      %281 = vmatpush1.msra.mxu0 0.0
      %282 = vmatprep.subr.mxu0 0.0
      %283 = vmatpush1.msra.mxu0 0.0
      %284 = vmatprep.subr.mxu0 0.0
      %285 = vmatpush1.msra.mxu0 0.0
      %286 = vmatprep.subr.mxu0 0.0
      %287 = vmatpush1.msra.mxu0 0.0
      %288 = vmatprep.subr.mxu0 0.0
      %289 = vmatpush1.msra.mxu0 0.0
      %290 = vmatprep.subr.mxu0 0.0
      %291 = vmatpush1.msra.mxu0 0.0
      %292 = vmatprep.subr.mxu0 0.0
      %293 = vmatpush1.msra.mxu0 0.0
      %294 = vmatprep.subr.mxu0 0.0
      %295 = vmatpush1.msra.mxu0 0.0
      %296 = vmatprep.subr.mxu0 0.0
      %297 = vmatpush1.msra.mxu0 0.0
      %298 = vmatprep.subr.mxu0 0.0
      %299 = vmatpush1.msra.mxu0 0.0
      %300 = vmatprep.subr.mxu0 0.0
      %301 = vmatpush1.msra.mxu0 0.0
      %302 = vmatprep.subr.mxu0 0.0
      %303 = vmatpush1.msra.mxu0 0.0
      %304 = vmatprep.subr.mxu0 0.0
      %305 = vmatpush1.msra.mxu0 0.0
      %306 = vmatprep.subr.mxu0 0.0
      %307 = vmatpush1.msra.mxu0 0.0
      %308 = vmatprep.subr.mxu0 0.0
      %309 = vmatpush1.msra.mxu0 0.0
      %310 = vmatprep.subr.mxu0 0.0
      %311 = vmatpush1.msra.mxu0 0.0
      %312 = vmatprep.subr.mxu0 0.0
      %313 = vmatpush1.msra.mxu0 0.0
      %314 = vmatprep.subr.mxu0 0.0
      %315 = vmatpush1.msra.mxu0 0.0
      %316 = vmatprep.subr.mxu0 0.0
      %317 = vmatpush1.msra.mxu0 0.0
      %318 = vmatprep.subr.mxu0 0.0
      %319 = vmatpush1.msra.mxu0 0.0
      %320 = vmatprep.subr.mxu0 0.0
      %321 = vmatpush1.msra.mxu0 0.0
      %322 = vmatprep.subr.mxu0 0.0
      %323 = vmatpush1.msra.mxu0 0.0
      %324 = vmatprep.mubr.f32.mxu0 0.0
      %325 = vmatmul.mubr.f32.gmra.mrb[0].mxu0 %v258
      %v326 = vpop.f32.mrb[0].mxu0
      %v327 = vadd.f32 %v255, %v326
      %v328 = vpop.f32.mrb[0].mxu0
      %329 = vdwg.mxu0
      %v330 = vmax.f32 %v327, 0.0
      %vm331 = vcmp.ne.f32.partialorder %v327, %v327
      %v332 = vadd.f32 %v327, 0.0
      %v333 = vand.u32 2147483647, %v327
      %v334 = vsub.f32 0.0, %v333
      %v335 = vmul.f32 %v334, 1.442695
      %v336 = vpow.pop %v335
      %v337 = vadd.f32 %v336, 1.0
      %v338 = vlog2.pop %v337
      %v339 = vmul.f32 %v338, 0.6931472
      %v340 = vmul.f32 -0.5, %v336
      %v341 = vadd.f32 %v340, 1.0
      %v342 = vmul.f32 %v341, %v336
      %v343 = vand.u32 2147483647, %v336
      %vm344 = vcmp.lt.f32.partialorder %v343, 0.0004427343
      %v345 = vsel %vm344, %v342, %v339
      %v346 = vadd.f32 %v330, %v345
      %v347 = vsel %vm331, %v332, %v346
      %v348 = vrsqrt.pop %v347
      %v349 = vmul.f32 %v347, %v348
      %vm350 = vcmp.eq.f32.partialorder %v347, inf
      %v351 = vsel %vm350, %v347, %v349
      %vm352 = vcmp.eq.f32.partialorder %v347, 0.0
      %v353 = vand.u32 %v347, 2147483648
      %v354 = vsel %vm352, %v353, %v351
      %356 = vrot.lane.b32.xlu0 %v354, 58
      %v357 = vpop.permute.xlu0 %356
      %v359 = vmul.f32 %v142, %v357
      %361 = vrot.lane.b32.xlu0 %v359, 64
      %v362 = vpop.permute.xlu0 %361
      %v364 = vadd.f32 %v327, %v362
      %v365 = vld [vmem:[%s1 + $0x80] sm:$0x3f]
      %v366 = vrot.slane %v143, 2
      %vm368 = vcmask 48128
      %v370 = vsel %vm368, %v364, 0
      %vm372 = vcmask 1045504
      %v374 = vsel %vm372, %v365, 0
      %376 = vmatprep.subr.mxu0 0.0
      %377 = vmatpush1.msra.mxu0 %v374
      %378 = vmatprep.subr.mxu0 0.0
      %379 = vmatpush1.msra.mxu0 0.0
      %380 = vmatprep.subr.mxu0 0.0
      %381 = vmatpush1.msra.mxu0 0.0
      %382 = vmatprep.subr.mxu0 0.0
      %383 = vmatpush1.msra.mxu0 0.0
      %384 = vmatprep.subr.mxu0 0.0
      %385 = vmatpush1.msra.mxu0 0.0
      %386 = vmatprep.subr.mxu0 0.0
      %387 = vmatpush1.msra.mxu0 0.0
      %388 = vmatprep.subr.mxu0 0.0
      %389 = vmatpush1.msra.mxu0 0.0
      %390 = vmatprep.subr.mxu0 0.0
      %391 = vmatpush1.msra.mxu0 0.0
      %392 = vmatprep.subr.mxu0 0.0
      %393 = vmatpush1.msra.mxu0 0.0
      %394 = vmatprep.subr.mxu0 0.0
      %395 = vmatpush1.msra.mxu0 0.0
      %396 = vmatprep.subr.mxu0 0.0
      %397 = vmatpush1.msra.mxu0 0.0
      %398 = vmatprep.subr.mxu0 0.0
      %399 = vmatpush1.msra.mxu0 0.0
      %400 = vmatprep.subr.mxu0 0.0
      %401 = vmatpush1.msra.mxu0 0.0
      %402 = vmatprep.subr.mxu0 0.0
      %403 = vmatpush1.msra.mxu0 0.0
      %404 = vmatprep.subr.mxu0 0.0
      %405 = vmatpush1.msra.mxu0 0.0
      %406 = vmatprep.subr.mxu0 0.0
      %407 = vmatpush1.msra.mxu0 0.0
      %408 = vmatprep.subr.mxu0 0.0
      %409 = vmatpush1.msra.mxu0 0.0
      %410 = vmatprep.subr.mxu0 0.0
      %411 = vmatpush1.msra.mxu0 0.0
      %412 = vmatprep.subr.mxu0 0.0
      %413 = vmatpush1.msra.mxu0 0.0
      %414 = vmatprep.subr.mxu0 0.0
      %415 = vmatpush1.msra.mxu0 0.0
      %416 = vmatprep.subr.mxu0 0.0
      %417 = vmatpush1.msra.mxu0 0.0
      %418 = vmatprep.subr.mxu0 0.0
      %419 = vmatpush1.msra.mxu0 0.0
      %420 = vmatprep.subr.mxu0 0.0
      %421 = vmatpush1.msra.mxu0 0.0
      %422 = vmatprep.subr.mxu0 0.0
      %423 = vmatpush1.msra.mxu0 0.0
      %424 = vmatprep.subr.mxu0 0.0
      %425 = vmatpush1.msra.mxu0 0.0
      %426 = vmatprep.subr.mxu0 0.0
      %427 = vmatpush1.msra.mxu0 0.0
      %428 = vmatprep.subr.mxu0 0.0
      %429 = vmatpush1.msra.mxu0 0.0
      %430 = vmatprep.subr.mxu0 0.0
      %431 = vmatpush1.msra.mxu0 0.0
      %432 = vmatprep.subr.mxu0 0.0
      %433 = vmatpush1.msra.mxu0 0.0
      %434 = vmatprep.subr.mxu0 0.0
      %435 = vmatpush1.msra.mxu0 0.0
      %436 = vmatprep.subr.mxu0 0.0
      %437 = vmatpush1.msra.mxu0 0.0
      %438 = vmatprep.subr.mxu0 0.0
      %439 = vmatpush1.msra.mxu0 0.0
      %440 = vmatprep.mubr.f32.mxu0 0.0
      %441 = vmatmul.mubr.f32.gmra.mrb[0].mxu0 %v370
      %v442 = vpop.f32.mrb[0].mxu0
      %v443 = vadd.f32 %v366, %v442
      %v444 = vpop.f32.mrb[0].mxu0
      %445 = vdwg.mxu0
      %v446 = vmax.f32 %v443, 0.0
      %v447 = vld [vmem:[%s1 + $0x88] sm:$0xff]
      %v448 = vld [vmem:[%s1 + $0x90] sm:$0xff]
      %450 = vrot.lane.b32.xlu0 %v446, 120
      %v451 = vpop.permute.xlu0 %450
      %v452 = vrot.slane %v143, 3
      %vm454 = vcmask 130048
      %v455 = vsel %vm454, %v451, 0
      %457 = vmatprep.subr.mxu0 0.0
      %458 = vmatpush1.msra.mxu0 %v447
      %459 = vmatprep.subr.mxu0 0.0
      %460 = vmatpush1.msra.mxu0 %v448
      %461 = vmatprep.subr.mxu0 0.0
      %462 = vmatpush1.msra.mxu0 0.0
      %463 = vmatprep.subr.mxu0 0.0
      %464 = vmatpush1.msra.mxu0 0.0
      %465 = vmatprep.subr.mxu0 0.0
      %466 = vmatpush1.msra.mxu0 0.0
      %467 = vmatprep.subr.mxu0 0.0
      %468 = vmatpush1.msra.mxu0 0.0
      %469 = vmatprep.subr.mxu0 0.0
      %470 = vmatpush1.msra.mxu0 0.0
      %471 = vmatprep.subr.mxu0 0.0
      %472 = vmatpush1.msra.mxu0 0.0
      %473 = vmatprep.subr.mxu0 0.0
      %474 = vmatpush1.msra.mxu0 0.0
      %475 = vmatprep.subr.mxu0 0.0
      %476 = vmatpush1.msra.mxu0 0.0
      %477 = vmatprep.subr.mxu0 0.0
      %478 = vmatpush1.msra.mxu0 0.0
      %479 = vmatprep.subr.mxu0 0.0
      %480 = vmatpush1.msra.mxu0 0.0
      %481 = vmatprep.subr.mxu0 0.0
      %482 = vmatpush1.msra.mxu0 0.0
      %483 = vmatprep.subr.mxu0 0.0
      %484 = vmatpush1.msra.mxu0 0.0
      %485 = vmatprep.subr.mxu0 0.0
      %486 = vmatpush1.msra.mxu0 0.0
      %487 = vmatprep.subr.mxu0 0.0
      %488 = vmatpush1.msra.mxu0 0.0
      %489 = vmatprep.subr.mxu0 0.0
      %490 = vmatpush1.msra.mxu0 0.0
      %491 = vmatprep.subr.mxu0 0.0
      %492 = vmatpush1.msra.mxu0 0.0
      %493 = vmatprep.subr.mxu0 0.0
      %494 = vmatpush1.msra.mxu0 0.0
      %495 = vmatprep.subr.mxu0 0.0
      %496 = vmatpush1.msra.mxu0 0.0
      %497 = vmatprep.subr.mxu0 0.0
      %498 = vmatpush1.msra.mxu0 0.0
      %499 = vmatprep.subr.mxu0 0.0
      %500 = vmatpush1.msra.mxu0 0.0
      %501 = vmatprep.subr.mxu0 0.0
      %502 = vmatpush1.msra.mxu0 0.0
      %503 = vmatprep.subr.mxu0 0.0
      %504 = vmatpush1.msra.mxu0 0.0
      %505 = vmatprep.subr.mxu0 0.0
      %506 = vmatpush1.msra.mxu0 0.0
      %507 = vmatprep.subr.mxu0 0.0
      %508 = vmatpush1.msra.mxu0 0.0
      %509 = vmatprep.subr.mxu0 0.0
      %510 = vmatpush1.msra.mxu0 0.0
      %511 = vmatprep.subr.mxu0 0.0
      %512 = vmatpush1.msra.mxu0 0.0
      %513 = vmatprep.subr.mxu0 0.0
      %514 = vmatpush1.msra.mxu0 0.0
      %515 = vmatprep.subr.mxu0 0.0
      %516 = vmatpush1.msra.mxu0 0.0
      %517 = vmatprep.subr.mxu0 0.0
      %518 = vmatpush1.msra.mxu0 0.0
      %519 = vmatprep.subr.mxu0 0.0
      %520 = vmatpush1.msra.mxu0 0.0
      %521 = vmatprep.mubr.f32.mxu0 0.0
      %522 = vmatmul.mubr.f32.gmra.mrb[0].mxu0 %v455
      %v523 = vpop.f32.mrb[0].mxu0
      %v524 = vadd.f32 %v452, %v523
      %v525 = vpop.f32.mrb[0].mxu0
      %526 = vdwg.mxu0
      %v527 = vxor.u32 %v524, 2147483648
      %v528 = vmul.f32 %v527, 1.442695
      %v529 = vpow.pop %v528
      %v530 = vadd.f32 %v529, 1.0
      %v531 = vrcp.pop %v530
      %v532 = vmul.f32 1.0, %v531
      %v533 = vlaneseq
      %v534 = vshrl.u32 %v533, 7
      %v535 = vlaneseq
      %v536 = vand.u32 %v535, 127
      %vm537 = vcmp.eq.s32.totalorder %v536, %v534
      %v538 = vlaneseq
      %v539 = vshrl.u32 %v538, 7
      %v540 = vsub.s32 0, %v539
      %v541 = vrot.slane %v443, %v540
      %v542 = vsel %vm537, %v541, 0.0
      %vm543 = vcmask 64512
      %v544 = vsel %vm543, %v542, 0.0
      %545 = vadd.xlane.f32.xlu0 %v544
      %v546 = vpop.xlane.xlu0 %545
      %v547 = vsub.s32 %v534, 1
      %vm548 = vcmp.eq.s32.totalorder %v536, %v547
      %v549 = vsel %vm548, %v541, 0.0
      %v550 = vsel %vm543, %v549, 0.0
      %551 = vadd.xlane.f32.xlu0 %v550
      %v552 = vpop.xlane.xlu0 %551
      %v553 = vlaneseq
      %v554 = vshrl.u32 %v553, 7
      %v555 = vsub.s32 4, %v554
      %v556 = vrot.slane %v143, %v555
      %v557 = vmul.f32 %v546, %v556
      %v558 = vadd.f32 %v238, %v557
      %v559 = vlaneseq
      %v560 = vshrl.u32 %v559, 7
      %v561 = vsub.s32 5, %v560
      %v562 = vrot.slane %v143, %v561
      %v563 = vmul.f32 %v552, %v562
      %v564 = vadd.f32 %v558, %v563
      %v565 = vtanh.pop %v564
      %v566 = vxor.u32 %v564, 2147483648
      %v567 = vmul.f32 %v566, 1.442695
      %v568 = vpow.pop %v567
      %v569 = vadd.f32 %v568, 1.0
      %v570 = vrcp.pop %v569
      %v571 = vmul.f32 1.0, %v570
      %573 = vrot.lane.b32.xlu0 %v571, 96
      %v574 = vpop.permute.xlu0 %573
      %v576 = vmul.f32 %v565, %v574
      %v577 = vld [vmem:[%s1 + $0x60] sm:$0xff]
      %v578 = vld [vmem:[%s1 + $0x68] sm:$0xff]
      %v579 = vld [vmem:[%s1 + $0x70] sm:$0xff]
      %v580 = vld [vmem:[%s1 + $0x78] sm:$0xff]
      %v581 = vlaneseq
      %v582 = vshrl.u32 %v581, 7
      %v583 = vsub.s32 6, %v582
      %v584 = vrot.slane %v143, %v583
      %586 = vrot.lane.b32.xlu0 %v576, 96
      %v587 = vpop.permute.xlu0 %586
      %v588 = vsel %vm153, %v587, 0
      %590 = vmatprep.subr.mxu0 0.0
      %591 = vmatpush1.msra.mxu0 %v577
      %592 = vmatprep.subr.mxu0 0.0
      %593 = vmatpush1.msra.mxu0 %v578
      %594 = vmatprep.subr.mxu0 0.0
      %595 = vmatpush1.msra.mxu0 %v579
      %596 = vmatprep.subr.mxu0 0.0
      %597 = vmatpush1.msra.mxu0 %v580
      %598 = vmatprep.subr.mxu0 0.0
      %599 = vmatpush1.msra.mxu0 0.0
      %600 = vmatprep.subr.mxu0 0.0
      %601 = vmatpush1.msra.mxu0 0.0
      %602 = vmatprep.subr.mxu0 0.0
      %603 = vmatpush1.msra.mxu0 0.0
      %604 = vmatprep.subr.mxu0 0.0
      %605 = vmatpush1.msra.mxu0 0.0
      %606 = vmatprep.subr.mxu0 0.0
      %607 = vmatpush1.msra.mxu0 0.0
      %608 = vmatprep.subr.mxu0 0.0
      %609 = vmatpush1.msra.mxu0 0.0
      %610 = vmatprep.subr.mxu0 0.0
      %611 = vmatpush1.msra.mxu0 0.0
      %612 = vmatprep.subr.mxu0 0.0
      %613 = vmatpush1.msra.mxu0 0.0
      %614 = vmatprep.subr.mxu0 0.0
      %615 = vmatpush1.msra.mxu0 0.0
      %616 = vmatprep.subr.mxu0 0.0
      %617 = vmatpush1.msra.mxu0 0.0
      %618 = vmatprep.subr.mxu0 0.0
      %619 = vmatpush1.msra.mxu0 0.0
      %620 = vmatprep.subr.mxu0 0.0
      %621 = vmatpush1.msra.mxu0 0.0
      %622 = vmatprep.subr.mxu0 0.0
      %623 = vmatpush1.msra.mxu0 0.0
      %624 = vmatprep.subr.mxu0 0.0
      %625 = vmatpush1.msra.mxu0 0.0
      %626 = vmatprep.subr.mxu0 0.0
      %627 = vmatpush1.msra.mxu0 0.0
      %628 = vmatprep.subr.mxu0 0.0
      %629 = vmatpush1.msra.mxu0 0.0
      %630 = vmatprep.subr.mxu0 0.0
      %631 = vmatpush1.msra.mxu0 0.0
      %632 = vmatprep.subr.mxu0 0.0
      %633 = vmatpush1.msra.mxu0 0.0
      %634 = vmatprep.subr.mxu0 0.0
      %635 = vmatpush1.msra.mxu0 0.0
      %636 = vmatprep.subr.mxu0 0.0
      %637 = vmatpush1.msra.mxu0 0.0
      %638 = vmatprep.subr.mxu0 0.0
      %639 = vmatpush1.msra.mxu0 0.0
      %640 = vmatprep.subr.mxu0 0.0
      %641 = vmatpush1.msra.mxu0 0.0
      %642 = vmatprep.subr.mxu0 0.0
      %643 = vmatpush1.msra.mxu0 0.0
      %644 = vmatprep.subr.mxu0 0.0
      %645 = vmatpush1.msra.mxu0 0.0
      %646 = vmatprep.subr.mxu0 0.0
      %647 = vmatpush1.msra.mxu0 0.0
      %648 = vmatprep.subr.mxu0 0.0
      %649 = vmatpush1.msra.mxu0 0.0
      %650 = vmatprep.subr.mxu0 0.0
      %651 = vmatpush1.msra.mxu0 0.0
      %652 = vmatprep.subr.mxu0 0.0
      %653 = vmatpush1.msra.mxu0 0.0
      %654 = vmatprep.mubr.f32.mxu0 0.0
      %655 = vmatmul.mubr.f32.gmra.mrb[0].mxu0 %v588
      %v656 = vpop.f32.mrb[0].mxu0
      %v657 = vadd.f32 %v584, %v656
      %v658 = vpop.f32.mrb[0].mxu0
      %659 = vdwg.mxu0
      %660 = vrot.lane.b32.xlu0 %v364, 12
      %v661 = vpop.permute.xlu0 %660
      %664 = vrot.lane.b32.xlu0 %v524, 18
      %v665 = vpop.permute.xlu0 %664
      %668 = vrot.lane.b32.xlu0 %v532, 18
      %v669 = vpop.permute.xlu0 %668
      %v671 = vsel %vm368, %v327, %v347
      %vm672 = vcmask 97280
      %v673 = vsel %vm672, %v671, %v661
      %vm674 = vcmask 146432
      %v675 = vsel %vm674, %v673, %v665
      %vm676 = vcmask 154624
      %v677 = vsel %vm676, %v675, %v669
      %vm678 = vcmask 162816
      %v679 = vsel %vm678, %v677, 0.0
      %v680 = vsel %vm147, %v679, 0.0
      %681 = vst [vmem:[%s140] sm:$0xff] %v657
      %682 = vst [vmem:[%s140 + $0x8] sm:$0xff] %v680
      %s683 = smul.u32 2, %s13
      %p684 = scmp.lt.s32.totalorder %s683, 3
      %s685 = scalar_select %p684, %s683, 3
      %s686 = smul.addr %s685, 8
      %s687 = scalar_lea.vmem %s2, %s686
      // Predicated region
      $region29: #{forward.1} parent=27 // pred_check
        %p688 = pneg %p78
      $region30: #{forward.1} parent=27 // pred_check_branch
        %690 = sbr.rel (%p688) target = $region32
      $region31: #{forward.1} parent=27 // pred_region
        %s691 = smul.u32 2, %s13
      $region32: #{forward.1} parent=27 // pred_fallthru
        _
    $region28: #{forward.1} parent=5 // pred_fallthru
      _
    %p692 = scmp.le.s32.totalorder 2, %s8
    // Predicated region
    $region33: #{forward.1} parent=5 // pred_check
      %p693 = pneg %p692
    $region34: #{forward.1} parent=5 // pred_check_branch
      %695 = sbr.rel (%p693) target = $region36
    $region35: #{forward.1} parent=5 // pred_region
      %s696 = ssub.s32 %s8, 2
      // Predicated region
      $region37: #{forward.1} parent=35 // pred_check
        %p697 = pneg %p84
      $region38: #{forward.1} parent=35 // pred_check_branch
        %699 = sbr.rel (%p697) target = $region40
      $region39: #{forward.1} parent=35 // pred_region
        %s700 = smul.u32 2, %s14
        %p701 = scmp.lt.s32.totalorder %s700, 3
        %s702 = scalar_select %p701, %s700, 3
        %s703 = smul.addr %s702, 8
        %s704 = scalar_lea.vmem %s2, %s703
      $region40: #{forward.1} parent=35 // pred_fallthru
        _
    $region36: #{forward.1} parent=5 // pred_fallthru
      _
  $region6: #{forward.1} parent=0 // loop_footer
    %s12 = sadd.s32 1, %s8
  $region7: #{forward.1} parent=0 // loop_footer_branch
    %7 = sbr.rel target = $region3
  $region8: #{forward.1} parent=0 // loop_exit
    _

</llo_original>
